<compile_context>
chip_gen: v7x
topology: tpu7x:2x2x1
jax: 0.10.0
libtpu: 0.0.40
codegen_flags: <defaults>
</compile_context>

<pallas_src>
import functools

import jax
import jax.numpy as jnp
from jax import lax
from jax.experimental import pallas as pl
from jax.experimental.pallas import tpu as pltpu


_NEG_LARGE = -1e30  # bias value for padded vocab columns: exp() underflows to 0


def _round_up(x: int, m: int) -> int:
    return ((x + m - 1) // m) * m


def _proj_logsoftmax_kernel(x_ref, w_ref, b_ref, o_ref, slab_ref, m_acc, l_acc):
    # x_ref:    (tm, tk)       activation row/k tile
    # w_ref:    (tv, tk)       weight tile in PyTorch (V, D) layout
    # b_ref:    (1, tv)        bias tile
    # o_ref:    (tm, Vp)       output row-slab, resident across (vocab, k) axes
    # slab_ref: (nj, tm, tv)   f32 logits slab scratch (one (tm, tv) tile per vocab block)
    # m_acc:    (tm, 1)        running max          (f32 scratch)
    # l_acc:    (tm, 1)        running sum of exp   (f32 scratch)
    j = pl.program_id(1)
    k = pl.program_id(2)
    nj = pl.num_programs(1)
    nk = pl.num_programs(2)

    @pl.when(jnp.logical_and(j == 0, k == 0))
    def _init():
        m_acc[...] = jnp.full_like(m_acc, -jnp.inf)
        l_acc[...] = jnp.zeros_like(l_acc)

    # Partial logits for this (row, vocab, k) tile: (tm, tk) . (tv, tk)^T -> (tm, tv).
    partial = lax.dot_general(
        x_ref[...],
        w_ref[...],
        dimension_numbers=(((1,), (1,)), ((), ())),
        preferred_element_type=jnp.float32,
    )

    @pl.when(k == 0)
    def _first_k():
        slab_ref[j] = b_ref[...].astype(jnp.float32) + partial

    @pl.when(k > 0)
    def _acc_k():
        slab_ref[j] = slab_ref[j] + partial

    # Contraction finished for this vocab tile: fold into online softmax stats.
    @pl.when(k == nk - 1)
    def _update_stats():
        logits_j = slab_ref[j]
        m_new = jnp.maximum(m_acc[...], jnp.max(logits_j, axis=-1, keepdims=True))
        l_acc[...] = l_acc[...] * jnp.exp(m_acc[...] - m_new) + jnp.sum(
            jnp.exp(logits_j - m_new), axis=-1, keepdims=True
        )
        m_acc[...] = m_new

    # Last vocab tile, last k step: normalize and emit the whole row-slab
    # (static slices -> unmasked, lane-dense stores).
    @pl.when(jnp.logical_and(j == nj - 1, k == nk - 1))
    def _finalize():
        lse = m_acc[...] + jnp.log(l_acc[...])
        n_vocab_tiles = slab_ref.shape[0]
        tv = slab_ref.shape[2]
        for jj in range(n_vocab_tiles):
            o_ref[:, jj * tv:(jj + 1) * tv] = (slab_ref[jj] - lse).astype(o_ref.dtype)


@functools.partial(jax.jit, static_argnames=("tm", "tv", "tk"))
def projection_layer(x, weight, bias, *, tm=None, tv=None, tk=None):
    """log_softmax(x @ weight.T + bias, axis=-1).

    x: (B, S, D); weight: (V, D) [PyTorch nn.Linear layout]; bias: (V,).
    Returns (B, S, V) in x.dtype (all matmul/softmax math in f32).
    """
    B, S, D = x.shape
    V = weight.shape[0]
    M = B * S

    # ---- static, MXU/lane-aligned tile selection ----
    if tv is None:
        tv = 512 if V >= 512 else _round_up(V, 128)
    if tk is None:
        tk = 512 if D >= 512 else _round_up(D, 128)
    Vp = _round_up(V, tv)
    Dp = _round_up(D, tk)
    nj = Vp // tv
    if tm is None:
        tm = 256 if M >= 256 else _round_up(max(M, 1), 8)
        # Keep the resident f32 slabs (double-buffered output + logits scratch,
        # ~= 3 * tm * Vp * 4 bytes) comfortably inside VMEM even on v7x (64 MiB).
        acc_budget = 24 << 20
        max_tm = max(8, (acc_budget // max(3 * Vp * 4, 1)) // 8 * 8)
        tm = max(8, min(tm, max_tm))
        # TODO(synk): for extremely large vocab (tm=8 still over budget) switch to a
        # two-pass log-softmax instead of a resident row-slab.
    Mp = _round_up(M, tm)

    # ---- pad to tile multiples (no-op when already aligned) ----
    x2 = x.reshape(M, D)
    if (Mp, Dp) != (M, D):
        x2 = jnp.pad(x2, ((0, Mp - M), (0, Dp - D)))
    w = weight
    if (Vp, Dp) != (V, D):
        w = jnp.pad(w, ((0, Vp - V), (0, Dp - D)))
    b2 = bias.reshape(1, V)
    if Vp != V:
        b2 = jnp.pad(b2, ((0, 0), (0, Vp - V)), constant_values=_NEG_LARGE)

    grid = (Mp // tm, nj, Dp // tk)

    # Explicit VMEM budget: double-buffered input tiles + resident output slab +
    # logits slab scratch + (lane-padded) running-stat scratch.
    vmem_bytes = (
        2 * tm * tk * x2.dtype.itemsize
        + 2 * tv * tk * w.dtype.itemsize
        + 2 * tv * b2.dtype.itemsize
        + 2 * tm * Vp * 4
        + nj * tm * tv * 4
        + 2 * tm * 128 * 4
    )
    vmem_limit = int(min(max(vmem_bytes * 3 // 2 + (8 << 20), 32 << 20), 60 << 20))

    out = pl.pallas_call(
        _proj_logsoftmax_kernel,
        out_shape=jax.ShapeDtypeStruct((Mp, Vp), jnp.float32),
        grid_spec=pltpu.PrefetchScalarGridSpec(
            num_scalar_prefetch=0,
            grid=grid,
            in_specs=[
                pl.BlockSpec((tm, tk), lambda i, j, k: (i, k)),   # x row/k tile
                pl.BlockSpec((tv, tk), lambda i, j, k: (j, k)),   # weight vocab/k tile
                pl.BlockSpec((1, tv), lambda i, j, k: (0, j)),    # bias vocab tile
            ],
            out_specs=pl.BlockSpec((tm, Vp), lambda i, j, k: (i, 0)),
            scratch_shapes=[
                pltpu.VMEM((nj, tm, tv), jnp.float32),  # logits slab
                pltpu.VMEM((tm, 1), jnp.float32),       # running max
                pltpu.VMEM((tm, 1), jnp.float32),       # running sum-exp
            ],
        ),
        compiler_params=pltpu.CompilerParams(
            dimension_semantics=("parallel", "arbitrary", "arbitrary"),
            vmem_limit_bytes=vmem_limit,
        ),
    )(x2, w, b2)

    out = out[:M, :V].astype(x.dtype)
    return out.reshape(B, S, V)


def _reference(x, weight, bias):
    logits = jnp.einsum("bsd,vd->bsv", x, weight) + bias
    return jax.nn.log_softmax(logits, axis=-1)


if __name__ == "__main__":
    key = jax.random.PRNGKey(0)

    # --- test 1: small shapes consistent with the module forward ---
    batch, seq, d_model, vocab = 2, 8, 32, 128
    kx, kw, kb = jax.random.split(key, 3)
    bound = 1.0 / (d_model ** 0.5)
    weight = jax.random.uniform(kw, (vocab, d_model), jnp.float32, -bound, bound)
    bias = jax.random.uniform(kb, (vocab,), jnp.float32, -bound, bound)
    x = jax.random.normal(kx, (batch, seq, d_model), jnp.float32)

    out = projection_layer(x, weight, bias)
    out = jax.block_until_ready(out)
    ref = _reference(x, weight, bias)
    assert out.shape == (batch, seq, vocab)
    assert jnp.allclose(out, ref, atol=2e-5, rtol=2e-5), "mismatch vs reference (test 1)"

    # --- test 2: ragged shapes + explicit small tiles to exercise the
    #     multi-tile grid (row / vocab / contraction) and padding paths ---
    batch2, seq2, d_model2, vocab2 = 2, 25, 160, 300
    k2x, k2w, k2b = jax.random.split(jax.random.PRNGKey(1), 3)
    bound2 = 1.0 / (d_model2 ** 0.5)
    weight2 = jax.random.uniform(k2w, (vocab2, d_model2), jnp.float32, -bound2, bound2)
    bias2 = jax.random.uniform(k2b, (vocab2,), jnp.float32, -bound2, bound2)
    x2 = jax.random.normal(k2x, (batch2, seq2, d_model2), jnp.float32)

    out2 = projection_layer(x2, weight2, bias2, tm=16, tv=128, tk=128)
    out2 = jax.block_until_ready(out2)
    ref2 = _reference(x2, weight2, bias2)
    assert out2.shape == (batch2, seq2, vocab2)
    assert jnp.allclose(out2, ref2, atol=2e-5, rtol=2e-5), "mismatch vs reference (test 2)"

    print("KERNEL_OK")
</pallas_src>

<mosaic_0001>
module attributes {stable_mosaic.version = 11 : i64} {
  func.func @_proj_logsoftmax_kernel(%arg0: i32, %arg1: i32, %arg2: i32, %arg3: memref<16x128xf32, #tpu.memory_space<vmem>>, %arg4: memref<128x128xf32, #tpu.memory_space<vmem>>, %arg5: memref<1x128xf32, #tpu.memory_space<vmem>>, %arg6: memref<16x128xf32, #tpu.memory_space<vmem>>, %arg7: memref<1x16x128xf32, #tpu.memory_space<vmem>>, %arg8: memref<16x1xf32, #tpu.memory_space<vmem>>, %arg9: memref<16x1xf32, #tpu.memory_space<vmem>>) attributes {dimension_semantics = [#tpu.dimension_semantics<parallel>, #tpu.dimension_semantics<arbitrary>, #tpu.dimension_semantics<arbitrary>], iteration_bounds = array<i64: 1, 1, 1>, scalar_prefetch = 0 : i64, scratch_operands = 3 : i64, tpu.core_type = #tpu.core_type<tc>, window_params = [{transform_indices = @transform_0, window_bounds = array<i64: 16, 128>}, {transform_indices = @transform_1, window_bounds = array<i64: 128, 128>}, {transform_indices = @transform_2, window_bounds = array<i64: 1, 128>}, {transform_indices = @transform_3, window_bounds = array<i64: 16, 128>}]} {
    %c0_i32 = arith.constant 0 : i32
    %0 = arith.cmpi eq, %arg1, %c0_i32 : i32
    %c0_i32_0 = arith.constant 0 : i32
    %1 = arith.cmpi eq, %arg2, %c0_i32_0 : i32
    %2 = arith.andi %0, %1 : i1
    %3 = arith.extui %2 : i1 to i32
    %c0_i32_1 = arith.constant 0 : i32
    %4 = arith.cmpi ne, %3, %c0_i32_1 : i32
    scf.if %4 {
      %cst_14 = arith.constant 0xFF800000 : f32
      %22 = vector.broadcast %cst_14 : f32 to vector<16x1xf32>
      %c0_15 = arith.constant 0 : index
      %c0_16 = arith.constant 0 : index
      %23 = vector.load %arg8[%c0_15, %c0_16] : memref<16x1xf32, #tpu.memory_space<vmem>>, vector<16x1xf32>
      tpu.vector_store %arg8[%c0_15, %c0_16], %22 {strides = array<i32>} : memref<16x1xf32, #tpu.memory_space<vmem>>, vector<16x1xf32>,
      %cst_17 = arith.constant 0.000000e+00 : f32
      %24 = vector.broadcast %cst_17 : f32 to vector<16x1xf32>
      %c0_18 = arith.constant 0 : index
      %c0_19 = arith.constant 0 : index
      %25 = vector.load %arg9[%c0_18, %c0_19] : memref<16x1xf32, #tpu.memory_space<vmem>>, vector<16x1xf32>
      tpu.vector_store %arg9[%c0_18, %c0_19], %24 {strides = array<i32>} : memref<16x1xf32, #tpu.memory_space<vmem>>, vector<16x1xf32>,
    } else {
    }
    %c0 = arith.constant 0 : index
    %c0_2 = arith.constant 0 : index
    %5 = vector.load %arg3[%c0, %c0_2] : memref<16x128xf32, #tpu.memory_space<vmem>>, vector<16x128xf32>
    %c0_3 = arith.constant 0 : index
    %c0_4 = arith.constant 0 : index
    %6 = vector.load %arg4[%c0_3, %c0_4] : memref<128x128xf32, #tpu.memory_space<vmem>>, vector<128x128xf32>
    %cst = arith.constant dense<0.000000e+00> : vector<16x128xf32>
    %7 = tpu.matmul %5, %6, %cst {dimension_numbers = #tpu.dot_dimension_numbers<[1], [1], [0], [0], [0, 0, 1, 0], [], []>} : vector<16x128xf32>, vector<128x128xf32>, vector<16x128xf32> -> vector<16x128xf32>
    %c0_i32_5 = arith.constant 0 : i32
    %8 = arith.cmpi eq, %arg2, %c0_i32_5 : i32
    %9 = arith.extui %8 : i1 to i32
    %c0_i32_6 = arith.constant 0 : i32
    %10 = arith.cmpi ne, %9, %c0_i32_6 : i32
    scf.if %10 {
      %c0_14 = arith.constant 0 : index
      %c0_15 = arith.constant 0 : index
      %22 = vector.load %arg5[%c0_14, %c0_15] : memref<1x128xf32, #tpu.memory_space<vmem>>, vector<1x128xf32>
      %23 = vector.broadcast %22 : vector<1x128xf32> to vector<16x128xf32>
      %24 = arith.addf %23, %7 : vector<16x128xf32>
      %25 = arith.index_cast %arg1 : i32 to index
      %c0_16 = arith.constant 0 : index
      %c0_17 = arith.constant 0 : index
      %26 = vector.load %arg7[%25, %c0_16, %c0_17] : memref<1x16x128xf32, #tpu.memory_space<vmem>>, vector<1x16x128xf32>
      %27 = vector.shape_cast %26 : vector<1x16x128xf32> to vector<16x128xf32>
      %28 = vector.shape_cast %24 : vector<16x128xf32> to vector<1x16x128xf32>
      tpu.vector_store %arg7[%25, %c0_16, %c0_17], %28 {strides = array<i32>} : memref<1x16x128xf32, #tpu.memory_space<vmem>>, vector<1x16x128xf32>,
    } else {
    }
    %c0_i32_7 = arith.constant 0 : i32
    %11 = arith.cmpi sgt, %arg2, %c0_i32_7 : i32
    %12 = arith.extui %11 : i1 to i32
    %c0_i32_8 = arith.constant 0 : i32
    %13 = arith.cmpi ne, %12, %c0_i32_8 : i32
    scf.if %13 {
      %22 = arith.index_cast %arg1 : i32 to index
      %c0_14 = arith.constant 0 : index
      %c0_15 = arith.constant 0 : index
      %23 = vector.load %arg7[%22, %c0_14, %c0_15] : memref<1x16x128xf32, #tpu.memory_space<vmem>>, vector<1x16x128xf32>
      %24 = vector.shape_cast %23 : vector<1x16x128xf32> to vector<16x128xf32>
      %25 = arith.addf %24, %7 : vector<16x128xf32>
      %26 = arith.index_cast %arg1 : i32 to index
      %c0_16 = arith.constant 0 : index
      %c0_17 = arith.constant 0 : index
      %27 = vector.load %arg7[%26, %c0_16, %c0_17] : memref<1x16x128xf32, #tpu.memory_space<vmem>>, vector<1x16x128xf32>
      %28 = vector.shape_cast %27 : vector<1x16x128xf32> to vector<16x128xf32>
      %29 = vector.shape_cast %25 : vector<16x128xf32> to vector<1x16x128xf32>
      tpu.vector_store %arg7[%26, %c0_16, %c0_17], %29 {strides = array<i32>} : memref<1x16x128xf32, #tpu.memory_space<vmem>>, vector<1x16x128xf32>,
    } else {
    }
    %c0_i32_9 = arith.constant 0 : i32
    %14 = arith.cmpi eq, %arg2, %c0_i32_9 : i32
    %15 = arith.extui %14 : i1 to i32
    %c0_i32_10 = arith.constant 0 : i32
    %16 = arith.cmpi ne, %15, %c0_i32_10 : i32
    scf.if %16 {
      %22 = arith.index_cast %arg1 : i32 to index
      %c0_14 = arith.constant 0 : index
      %c0_15 = arith.constant 0 : index
      %23 = vector.load %arg7[%22, %c0_14, %c0_15] : memref<1x16x128xf32, #tpu.memory_space<vmem>>, vector<1x16x128xf32>
      %24 = vector.shape_cast %23 : vector<1x16x128xf32> to vector<16x128xf32>
      %c0_16 = arith.constant 0 : index
      %c0_17 = arith.constant 0 : index
      %25 = vector.load %arg8[%c0_16, %c0_17] : memref<16x1xf32, #tpu.memory_space<vmem>>, vector<16x1xf32>
      %cst_18 = arith.constant dense<0xFF800000> : vector<16xf32>
      %26 = vector.multi_reduction <maximumf>, %24, %cst_18 [1] : vector<16x128xf32> to vector<16xf32>
      %27 = vector.shape_cast %26 : vector<16xf32> to vector<16x1xf32>
      %28 = arith.maximumf %25, %27 : vector<16x1xf32>
      %c0_19 = arith.constant 0 : index
      %c0_20 = arith.constant 0 : index
      %29 = vector.load %arg9[%c0_19, %c0_20] : memref<16x1xf32, #tpu.memory_space<vmem>>, vector<16x1xf32>
      %c0_21 = arith.constant 0 : index
      %c0_22 = arith.constant 0 : index
      %30 = vector.load %arg8[%c0_21, %c0_22] : memref<16x1xf32, #tpu.memory_space<vmem>>, vector<16x1xf32>
      %31 = arith.subf %30, %28 : vector<16x1xf32>
      %32 = math.exp %31 : vector<16x1xf32>
      %33 = arith.mulf %29, %32 : vector<16x1xf32>
      %34 = vector.broadcast %28 : vector<16x1xf32> to vector<16x128xf32>
      %35 = arith.subf %24, %34 : vector<16x128xf32>
      %36 = math.exp %35 : vector<16x128xf32>
      %cst_23 = arith.constant dense<0.000000e+00> : vector<16xf32>
      %37 = vector.multi_reduction <add>, %36, %cst_23 [1] : vector<16x128xf32> to vector<16xf32>
      %38 = vector.shape_cast %37 : vector<16xf32> to vector<16x1xf32>
      %39 = arith.addf %33, %38 : vector<16x1xf32>
      %c0_24 = arith.constant 0 : index
      %c0_25 = arith.constant 0 : index
      %40 = vector.load %arg9[%c0_24, %c0_25] : memref<16x1xf32, #tpu.memory_space<vmem>>, vector<16x1xf32>
      tpu.vector_store %arg9[%c0_24, %c0_25], %39 {strides = array<i32>} : memref<16x1xf32, #tpu.memory_space<vmem>>, vector<16x1xf32>,
      %c0_26 = arith.constant 0 : index
      %c0_27 = arith.constant 0 : index
      %41 = vector.load %arg8[%c0_26, %c0_27] : memref<16x1xf32, #tpu.memory_space<vmem>>, vector<16x1xf32>
      tpu.vector_store %arg8[%c0_26, %c0_27], %28 {strides = array<i32>} : memref<16x1xf32, #tpu.memory_space<vmem>>, vector<16x1xf32>,
    } else {
    }
    %c0_i32_11 = arith.constant 0 : i32
    %17 = arith.cmpi eq, %arg1, %c0_i32_11 : i32
    %c0_i32_12 = arith.constant 0 : i32
    %18 = arith.cmpi eq, %arg2, %c0_i32_12 : i32
    %19 = arith.andi %17, %18 : i1
    %20 = arith.extui %19 : i1 to i32
    %c0_i32_13 = arith.constant 0 : i32
    %21 = arith.cmpi ne, %20, %c0_i32_13 : i32
    scf.if %21 {
      %c0_14 = arith.constant 0 : index
      %c0_15 = arith.constant 0 : index
      %22 = vector.load %arg8[%c0_14, %c0_15] : memref<16x1xf32, #tpu.memory_space<vmem>>, vector<16x1xf32>
      %c0_16 = arith.constant 0 : index
      %c0_17 = arith.constant 0 : index
      %23 = vector.load %arg9[%c0_16, %c0_17] : memref<16x1xf32, #tpu.memory_space<vmem>>, vector<16x1xf32>
      %24 = math.log %23 : vector<16x1xf32>
      %25 = arith.addf %22, %24 : vector<16x1xf32>
      %c0_18 = arith.constant 0 : index
      %c0_19 = arith.constant 0 : index
      %c0_20 = arith.constant 0 : index
      %26 = vector.load %arg7[%c0_18, %c0_19, %c0_20] : memref<1x16x128xf32, #tpu.memory_space<vmem>>, vector<1x16x128xf32>
      %27 = vector.shape_cast %26 : vector<1x16x128xf32> to vector<16x128xf32>
      %28 = vector.broadcast %25 : vector<16x1xf32> to vector<16x128xf32>
      %29 = arith.subf %27, %28 : vector<16x128xf32>
      %c0_21 = arith.constant 0 : index
      %c0_22 = arith.constant 0 : index
      %30 = vector.load %arg6[%c0_21, %c0_22] : memref<16x128xf32, #tpu.memory_space<vmem>>, vector<16x128xf32>
      tpu.vector_store %arg6[%c0_21, %c0_22], %29 {strides = array<i32>} : memref<16x128xf32, #tpu.memory_space<vmem>>, vector<16x128xf32>,
    } else {
    }
    return
  }
  func.func @transform_0(%arg0: i32, %arg1: i32, %arg2: i32) -> (i32, i32) {
    %c0_i32 = arith.constant 0 : i32
    return %arg0, %arg2 : i32, i32
  }
  func.func @transform_1(%arg0: i32, %arg1: i32, %arg2: i32) -> (i32, i32) {
    %c0_i32 = arith.constant 0 : i32
    return %arg1, %arg2 : i32, i32
  }
  func.func @transform_2(%arg0: i32, %arg1: i32, %arg2: i32) -> (i32, i32) {
    %c0_i32 = arith.constant 0 : i32
    %c0_i32_0 = arith.constant 0 : i32
    return %c0_i32, %arg1 : i32, i32
  }
  func.func @transform_3(%arg0: i32, %arg1: i32, %arg2: i32) -> (i32, i32) {
    %c0_i32 = arith.constant 0 : i32
    %c0_i32_0 = arith.constant 0 : i32
    return %arg0, %c0_i32 : i32, i32
  }
}

</mosaic_0001>

<llo_original>
// kernel: projection_layer.1
$region0: #{projection_layer.1}
  #allocation0 [shape = 'u32[]', space=smem, size = 0x4, offset = 0x4, fixed_abs, tag = 'smem constant byte address 0x4 - core index']
  #allocation1 [shape = 'u32[144,128]{1,0:T(1,128)}', space=vmem, size = 0x12000, scoped, tag = 'internal scratch']
  #allocation2 [shape = 'f32[1,16,128]{2,1,0:T(8,128)}', space=vmem, size = 0x2000, scoped, tag = 'scratch operand']
  #allocation3 [shape = 'f32[16,1]{1,0:T(8,128)}', space=vmem, size = 0x2000, scoped, tag = 'scratch operand']
  #allocation4 [shape = 'f32[16,1]{1,0:T(8,128)}', space=vmem, size = 0x2000, scoped, tag = 'scratch operand']
  %s0 = inlined_call_operand.vmem [shape: f32[16,128], index: 0, kind: input, shape index: {}]
  %s1 = inlined_call_operand.vmem [shape: f32[128,128], index: 1, kind: input, shape index: {}]
  %s2 = inlined_call_operand.vmem [shape: f32[1,128], index: 2, kind: input, shape index: {}]
  %s3 = inlined_call_operand.hbm [shape: f32[16,128], index: 3, kind: output, shape index: {}]
  %s4 = sld [smem:[#allocation0]]
  $region42: #{projection_layer.1} parent=0
    _
  %s6 = ssub.s32 1, %s4
  %s7 = scalar_select 0, %s6, %s4
  $region1: #{projection_layer.1} parent=0
    #allocation5 [shape = 'u8[8192]{0}', space=vmem, size = 0x2000, scoped, tag = 'output window, operand 0, single buffered']
    #allocation6 [shape = 's32[1]{0}', space=sflag, size = 0x4, scoped, tag = 'scoped memory for projection_layer.1']
    %8 = vsyncpa [#allocation6], 0
    // Predicated region
    $region2: #{projection_layer.1} parent=1 // pred_check
      _
    $region3: #{projection_layer.1} parent=1 // pred_check_branch
      %10 = sbr.rel (0) target = $region5
    $region4: #{projection_layer.1} parent=1 // pred_region
      _
    $region5: #{projection_layer.1} parent=1 // pred_fallthru
      _
    // Predicated region
    $region6: #{projection_layer.1} parent=1 // pred_check
      _
    $region7: #{projection_layer.1} parent=1 // pred_check_branch
      %12 = sbr.rel (0) target = $region9
    $region8: #{projection_layer.1} parent=1 // pred_region
      _
    $region9: #{projection_layer.1} parent=1 // pred_fallthru
      _
    // Predicated region
    $region10: #{projection_layer.1} parent=1 // pred_check
      _
    $region11: #{projection_layer.1} parent=1 // pred_check_branch
      %14 = sbr.rel (0) target = $region13
    $region12: #{projection_layer.1} parent=1 // pred_region
      _
    $region13: #{projection_layer.1} parent=1 // pred_fallthru
      _
    %p15 = scmp.eq.s32.totalorder 0, 0
    %p16 = scmp.eq.s32.totalorder 0, 0
    %p17 = pnand %p15, %p16
    %p18 = pneg %p17
    // Predicated region
    $region14: #{projection_layer.1} parent=1 // pred_check
      _
    $region15: #{projection_layer.1} parent=1 // pred_check_branch
      %20 = sbr.rel (%p17) target = $region17
    $region16: #{projection_layer.1} parent=1 // pred_region
      %vm21 = vcmask 7168
      %22 = vst.msk [vmem:[#allocation3] sm:$0xff] %vm21, -inf
      %23 = vst.msk [vmem:[#allocation3 + $0x8] sm:$0xff] %vm21, -inf
      %24 = vst.msk [vmem:[#allocation4] sm:$0xff] %vm21, 0.0
      %25 = vst.msk [vmem:[#allocation4 + $0x8] sm:$0xff] %vm21, 0.0
    $region17: #{projection_layer.1} parent=1 // pred_fallthru
      _
    %v26 = vld [vmem:[%s0] sm:$0xff]
    %v27 = vld [vmem:[%s0 + $0x8] sm:$0xff]
    %v28 = vld [vmem:[%s1] sm:$0xff]
    %v29 = vld [vmem:[%s1 + $0x8] sm:$0xff]
    %v30 = vld [vmem:[%s1 + $0x10] sm:$0xff]
    %v31 = vld [vmem:[%s1 + $0x18] sm:$0xff]
    %v32 = vld [vmem:[%s1 + $0x20] sm:$0xff]
    %v33 = vld [vmem:[%s1 + $0x28] sm:$0xff]
    %v34 = vld [vmem:[%s1 + $0x30] sm:$0xff]
    %v35 = vld [vmem:[%s1 + $0x38] sm:$0xff]
    %v36 = vld [vmem:[%s1 + $0x40] sm:$0xff]
    %v37 = vld [vmem:[%s1 + $0x48] sm:$0xff]
    %v38 = vld [vmem:[%s1 + $0x50] sm:$0xff]
    %v39 = vld [vmem:[%s1 + $0x58] sm:$0xff]
    %v40 = vld [vmem:[%s1 + $0x60] sm:$0xff]
    %v41 = vld [vmem:[%s1 + $0x68] sm:$0xff]
    %v42 = vld [vmem:[%s1 + $0x70] sm:$0xff]
    %v43 = vld [vmem:[%s1 + $0x78] sm:$0xff]
    %44 = vmatprep.subr.mxu0 0.0
    %45 = vmatpush1.xpose.msra.mxu0 %v28
    %46 = vmatprep.subr.mxu0 0.0
    %47 = vmatpush1.xpose.msra.mxu0 %v29
    %48 = vmatprep.subr.mxu0 0.0
    %49 = vmatpush1.xpose.msra.mxu0 %v30
    %50 = vmatprep.subr.mxu0 0.0
    %51 = vmatpush1.xpose.msra.mxu0 %v31
    %52 = vmatprep.subr.mxu0 0.0
    %53 = vmatpush1.xpose.msra.mxu0 %v32
    %54 = vmatprep.subr.mxu0 0.0
    %55 = vmatpush1.xpose.msra.mxu0 %v33
    %56 = vmatprep.subr.mxu0 0.0
    %57 = vmatpush1.xpose.msra.mxu0 %v34
    %58 = vmatprep.subr.mxu0 0.0
    %59 = vmatpush1.xpose.msra.mxu0 %v35
    %60 = vmatprep.subr.mxu0 0.0
    %61 = vmatpush1.xpose.msra.mxu0 %v36
    %62 = vmatprep.subr.mxu0 0.0
    %63 = vmatpush1.xpose.msra.mxu0 %v37
    %64 = vmatprep.subr.mxu0 0.0
    %65 = vmatpush1.xpose.msra.mxu0 %v38
    %66 = vmatprep.subr.mxu0 0.0
    %67 = vmatpush1.xpose.msra.mxu0 %v39
    %68 = vmatprep.subr.mxu0 0.0
    %69 = vmatpush1.xpose.msra.mxu0 %v40
    %70 = vmatprep.subr.mxu0 0.0
    %71 = vmatpush1.xpose.msra.mxu0 %v41
    %72 = vmatprep.subr.mxu0 0.0
    %73 = vmatpush1.xpose.msra.mxu0 %v42
    %74 = vmatprep.subr.mxu0 0.0
    %75 = vmatpush1.xpose.msra.mxu0 %v43
    %76 = vmatprep.subr.mxu0 0.0
    %77 = vmatpush1.xpose.msra.mxu0 0.0
    %78 = vmatprep.subr.mxu0 0.0
    %79 = vmatpush1.xpose.msra.mxu0 0.0
    %80 = vmatprep.subr.mxu0 0.0
    %81 = vmatpush1.xpose.msra.mxu0 0.0
    %82 = vmatprep.subr.mxu0 0.0
    %83 = vmatpush1.xpose.msra.mxu0 0.0
    %84 = vmatprep.subr.mxu0 0.0
    %85 = vmatpush1.xpose.msra.mxu0 0.0
    %86 = vmatprep.subr.mxu0 0.0
    %87 = vmatpush1.xpose.msra.mxu0 0.0
    %88 = vmatprep.subr.mxu0 0.0
    %89 = vmatpush1.xpose.msra.mxu0 0.0
    %90 = vmatprep.subr.mxu0 0.0
    %91 = vmatpush1.xpose.msra.mxu0 0.0
    %92 = vmatprep.subr.mxu0 0.0
    %93 = vmatpush1.xpose.msra.mxu0 0.0
    %94 = vmatprep.subr.mxu0 0.0
    %95 = vmatpush1.xpose.msra.mxu0 0.0
    %96 = vmatprep.subr.mxu0 0.0
    %97 = vmatpush1.xpose.msra.mxu0 0.0
    %98 = vmatprep.subr.mxu0 0.0
    %99 = vmatpush1.xpose.msra.mxu0 0.0
    %100 = vmatprep.subr.mxu0 0.0
    %101 = vmatpush1.xpose.msra.mxu0 0.0
    %102 = vmatprep.subr.mxu0 0.0
    %103 = vmatpush1.xpose.msra.mxu0 0.0
    %104 = vmatprep.subr.mxu0 0.0
    %105 = vmatpush1.xpose.msra.mxu0 0.0
    %106 = vmatprep.subr.mxu0 0.0
    %107 = vmatpush1.xpose.msra.mxu0 0.0
    %108 = vmatprep.mubr.f32.mxu0 0.0
    %109 = vmatmul.mubr.f32.gmra.mrb[0].mxu0 %v26
    %v110 = vpop.f32.mrb[0].mxu0
    %v111 = vadd.f32 0.0, %v110
    %v112 = vpop.f32.mrb[0].mxu0
    %113 = vmatprep.mubr.f32.mxu0 0.0
    %114 = vmatmul.mubr.f32.gmra.mrb[0].mxu0 %v27
    %v115 = vpop.f32.mrb[0].mxu0
    %v116 = vadd.f32 0.0, %v115
    %v117 = vpop.f32.mrb[0].mxu0
    %118 = vdwg.mxu0
    // Predicated region
    $region18: #{projection_layer.1} parent=1 // pred_check
      %p119 = pneg %p16
    $region19: #{projection_layer.1} parent=1 // pred_check_branch
      %121 = sbr.rel (%p119) target = $region21
    $region20: #{projection_layer.1} parent=1 // pred_region
      %v122 = vld [vmem:[%s2] sm:$0x1]
      %v124 = vlaneseq
      %v125 = vshrl.u32 %v124, 7
      %v126 = vsub.s32 0, %v125
      %v127 = vrot.slane %v122, %v126
      %v129 = vadd.f32 %v127, %v111
      %v130 = vadd.f32 %v127, %v116
      %s131 = smul.u32 0, 16
      %s132 = scalar_lea.vmem [#allocation2], %s131
      %133 = vst [vmem:[%s132] sm:$0xff] %v129
      %134 = vst [vmem:[%s132 + $0x8] sm:$0xff] %v130
    $region21: #{projection_layer.1} parent=1 // pred_fallthru
      _
    %p135 = scmp.gt.s32.totalorder 0, 0
    // Predicated region
    $region22: #{projection_layer.1} parent=1 // pred_check
      %p136 = pneg %p135
    $region23: #{projection_layer.1} parent=1 // pred_check_branch
      %138 = sbr.rel (%p136) target = $region25
    $region24: #{projection_layer.1} parent=1 // pred_region
      %s139 = smul.u32 0, 16
      %s140 = scalar_lea.vmem [#allocation2], %s139
      %v141 = vld [vmem:[%s140] sm:$0xff]
      %v142 = vld [vmem:[%s140 + $0x8] sm:$0xff]
      %v143 = vadd.f32 %v141, %v111
      %v144 = vadd.f32 %v142, %v116
      %145 = vst [vmem:[%s140] sm:$0xff] %v143
      %146 = vst [vmem:[%s140 + $0x8] sm:$0xff] %v144
    $region25: #{projection_layer.1} parent=1 // pred_fallthru
      _
    // Predicated region
    $region26: #{projection_layer.1} parent=1 // pred_check
      %p147 = pneg %p16
    $region27: #{projection_layer.1} parent=1 // pred_check_branch
      %149 = sbr.rel (%p147) target = $region29
    $region28: #{projection_layer.1} parent=1 // pred_region
      %s150 = smul.u32 0, 16
      %s151 = scalar_lea.vmem [#allocation2], %s150
      %v152 = vld [vmem:[%s151] sm:$0xff]
      %v153 = vld [vmem:[%s151 + $0x8] sm:$0xff]
      %v154 = vld [vmem:[#allocation3] sm:$0xff]
      %v155 = vld [vmem:[#allocation3 + $0x8] sm:$0xff]
      %156 = vmax.xlane.f32.xlu0 %v152
      %v157 = vpop.xlane.xlu0 %156
      %158 = vmax.xlane.f32.xlu0 %v153
      %v159 = vpop.xlane.xlu0 %158
      %v160 = vmax.f32 %v154, %v157
      %v161 = vmax.f32 %v155, %v159
      %v162 = vld [vmem:[#allocation4] sm:$0xff]
      %v163 = vld [vmem:[#allocation4 + $0x8] sm:$0xff]
      %v164 = vsub.f32 %v154, %v160
      %v165 = vsub.f32 %v155, %v161
      %v166 = vmul.f32 %v164, 1.442695
      %v167 = vpow.pop %v166
      %v168 = vmul.f32 %v165, 1.442695
      %v169 = vpow.pop %v168
      %v170 = vmul.f32 %v162, %v167
      %v171 = vmul.f32 %v163, %v169
      %173 = vset.pattern.permute.xlu0 0
      %174 = vperm.xlu0 %173, %v160
      %v175 = vpop.permute.xlu0 %174
      %178 = vset.pattern.permute.xlu0 0
      %179 = vperm.xlu0 %178, %v161
      %v180 = vpop.permute.xlu0 %179
      %v182 = vsub.f32 %v152, %v175
      %v183 = vsub.f32 %v153, %v180
      %v184 = vmul.f32 %v182, 1.442695
      %v185 = vpow.pop %v184
      %v186 = vmul.f32 %v183, 1.442695
      %v187 = vpow.pop %v186
      %188 = vadd.xlane.f32.xlu0 %v185
      %v189 = vpop.xlane.xlu0 %188
      %190 = vadd.xlane.f32.xlu0 %v187
      %v191 = vpop.xlane.xlu0 %190
      %v192 = vadd.f32 %v170, %v189
      %v193 = vadd.f32 %v171, %v191
      %vm194 = vcmask 7168
      %195 = vst.msk [vmem:[#allocation4] sm:$0xff] %vm194, %v192
      %196 = vst.msk [vmem:[#allocation4 + $0x8] sm:$0xff] %vm194, %v193
      %197 = vst.msk [vmem:[#allocation3] sm:$0xff] %vm194, %v160
      %198 = vst.msk [vmem:[#allocation3 + $0x8] sm:$0xff] %vm194, %v161
    $region29: #{projection_layer.1} parent=1 // pred_fallthru
      _
    // Predicated region
    $region30: #{projection_layer.1} parent=1 // pred_check
      _
    $region31: #{projection_layer.1} parent=1 // pred_check_branch
      %200 = sbr.rel (%p17) target = $region33
    $region32: #{projection_layer.1} parent=1 // pred_region
      %v201 = vld [vmem:[#allocation3] sm:$0xff]
      %v202 = vld [vmem:[#allocation3 + $0x8] sm:$0xff]
      %v203 = vld [vmem:[#allocation4] sm:$0xff]
      %v204 = vld [vmem:[#allocation4 + $0x8] sm:$0xff]
      %v205 = vlog2.pop %v203
      %v206 = vmul.f32 %v205, 0.6931472
      %v207 = vlog2.pop %v204
      %v208 = vmul.f32 %v207, 0.6931472
      %v209 = vadd.f32 %v201, %v206
      %v210 = vadd.f32 %v202, %v208
      %v211 = vld [vmem:[#allocation2] sm:$0xff]
      %v212 = vld [vmem:[#allocation2 + $0x8] sm:$0xff]
      %214 = vset.pattern.permute.xlu0 0
      %215 = vperm.xlu0 %214, %v209
      %v216 = vpop.permute.xlu0 %215
      %219 = vset.pattern.permute.xlu0 0
      %220 = vperm.xlu0 %219, %v210
      %v221 = vpop.permute.xlu0 %220
      %v223 = vsub.f32 %v211, %v216
      %v224 = vsub.f32 %v212, %v221
      %225 = vst [vmem:[#allocation5] sm:$0xff] %v223
      %226 = vst [vmem:[#allocation5 + $0x8] sm:$0xff] %v224
    $region33: #{projection_layer.1} parent=1 // pred_fallthru
      _
    // Predicated region
    $region34: #{projection_layer.1} parent=1 // pred_check
      _
    $region35: #{projection_layer.1} parent=1 // pred_check_branch
      %228 = sbr.rel (0) target = $region37
    $region36: #{projection_layer.1} parent=1 // pred_region
      %s230 = ssub.s32 256, 256
      %231 = vsyncadd [#allocation6], %s230
      %s232 = sshll.u32 [#allocation5], 4
      %s233 = int_to_ptr.vmem [resolvable:$true] %s232
      %238 = dma.vmem_to_hbm [thread:$0]  %s233, 256, %s3, [#allocation6], 128, 128, 8
    $region37: #{projection_layer.1} parent=1 // pred_fallthru
      _
    // Predicated region
    $region38: #{projection_layer.1} parent=1 // pred_check
      _
    $region39: #{projection_layer.1} parent=1 // pred_check_branch
      %240 = sbr.rel (0) target = $region41
    $region40: #{projection_layer.1} parent=1 // pred_region
      %241 = dma.done [#allocation6], 256
    $region41: #{projection_layer.1} parent=1 // pred_fallthru
      _
    %242 = vsyncpa [#allocation6], 1

</llo_original>
